<compile_context>
chip_gen: v6e
topology: v6e:2x2x1
jax: 0.10.0
libtpu: 0.0.40
codegen_flags: <defaults>
</compile_context>

<pallas_src>
import math
from functools import partial

import jax
import jax.numpy as jnp
from jax.experimental import pallas as pl
from jax.experimental.pallas import tpu as pltpu


def _round_up(x, m):
    return (x + m - 1) // m * m


def _vmem_limit_bytes():
    # Generation-aware VMEM budget: leave headroom for Mosaic internal scratch.
    # ~48 MiB on v7x (64 MiB physical), capped at 96 MiB on v5e/v6e (128 MiB physical).
    try:
        cap = pltpu.get_tpu_info().vmem_capacity_bytes
    except Exception:
        cap = 64 * 1024 * 1024
    return int(min(cap - 16 * 1024 * 1024, 96 * 1024 * 1024))


# ----------------------------------------------------------------------------
# Fused matmul kernel (1x1 convs):  out = act((A @ B) + bias [+ residual])
# ----------------------------------------------------------------------------
def _make_matmul_kernel(has_res, do_relu):
    def kernel(*refs):
        if has_res:
            a_ref, b_ref, t_ref, r_ref, o_ref = refs
        else:
            a_ref, b_ref, t_ref, o_ref = refs
            r_ref = None
        # bf16 x bf16 -> f32 accumulation on the MXU (single full-K block per tile).
        out = jnp.dot(a_ref[...], b_ref[...], preferred_element_type=jnp.float32)
        out = out + t_ref[...]                       # folded BN bias (f32)
        if has_res:
            out = out + r_ref[...].astype(jnp.float32)
        if do_relu:
            out = jnp.maximum(out, 0.0)
        o_ref[...] = out.astype(o_ref.dtype)
    return kernel


@partial(jax.jit, static_argnames=("do_relu",))
def matmul_bn_act(a, b, bias, residual, do_relu):
    """a:(M,K) bf16   b:(K,N) bf16 (BN scale folded)   bias:(N,) f32   residual:(M,N) bf16|None."""
    M, K = a.shape
    _, N = b.shape
    # Lane-dense N tiles up to 512 (weight panel loaded once when N<=512), large M tiles
    # rounded to multiples of 16 rows (bf16 packs [16,128] per vreg), whole K as one block.
    tn = N if N <= 512 else 512
    tm = min(1024, _round_up(M, 16))
    grid = (pl.cdiv(M, tm), pl.cdiv(N, tn))

    has_res = residual is not None
    in_specs = [
        pl.BlockSpec((tm, K), lambda i, j: (i, 0)),
        pl.BlockSpec((K, tn), lambda i, j: (0, j)),
        pl.BlockSpec((1, tn), lambda i, j: (0, j)),
    ]
    args = [a, b, bias.reshape(1, N)]
    if has_res:
        in_specs.append(pl.BlockSpec((tm, tn), lambda i, j: (i, j)))
        args.append(residual)

    return pl.pallas_call(
        _make_matmul_kernel(has_res, do_relu),
        out_shape=jax.ShapeDtypeStruct((M, N), jnp.bfloat16),
        grid=grid,
        in_specs=in_specs,
        out_specs=pl.BlockSpec((tm, tn), lambda i, j: (i, j)),
        compiler_params=pltpu.CompilerParams(
            dimension_semantics=("parallel", "parallel"),
            vmem_limit_bytes=_vmem_limit_bytes()),
    )(*args)


@partial(jax.jit, static_argnames=("stride", "relu"))
def conv1x1_bn(x, w, bias, residual=None, *, stride=1, relu=True):
    """x: NHWC bf16.  w: (Cin, Cout) bf16 (BN scale pre-folded).  bias: (Cout,) f32."""
    if stride > 1:
        x = x[:, ::stride, ::stride, :]
    N, H, W, Cin = x.shape
    Cout = w.shape[-1]
    M = N * H * W
    res2d = None if residual is None else residual.reshape(M, Cout)
    out = matmul_bn_act(x.reshape(M, Cin), w, bias, res2d, relu)
    return out.reshape(N, H, W, Cout)


# ----------------------------------------------------------------------------
# Direct 3x3 conv kernel: taps accumulated from shifted in-VMEM windows (no HBM im2col)
# ----------------------------------------------------------------------------
def _make_conv3x3_kernel(stride, Ho, Wo, Cin, do_relu):
    def kernel(x_ref, w_ref, t_ref, o_ref):
        # x_ref: (1, Hp, Wp, Cin)   w_ref: (9, Cin, tn)   t_ref: (1, tn)   o_ref: (1, Ho, Wo, tn)
        tn = o_ref.shape[-1]
        acc = jnp.zeros((Ho * Wo, tn), jnp.float32)
        for t in range(9):                      # statically unrolled 9-tap reduction
            i, j = divmod(t, 3)
            if stride == 1:
                a = x_ref[0, i:i + Ho, j:j + Wo, :]
            else:
                a = x_ref[0, pl.ds(i, Ho, stride=stride), pl.ds(j, Wo, stride=stride), :]
            acc = acc + jnp.dot(a.reshape(Ho * Wo, Cin), w_ref[t],
                                preferred_element_type=jnp.float32)
        acc = acc + t_ref[...]                  # folded BN bias
        if do_relu:
            acc = jnp.maximum(acc, 0.0)
        o_ref[...] = acc.reshape(1, Ho, Wo, tn).astype(o_ref.dtype)
    return kernel


@partial(jax.jit, static_argnames=("stride", "relu"))
def conv3x3_bn(x, w, bias, *, stride=1, relu=True):
    """x: NHWC bf16.  w: (9, Cin, Cout) bf16 (BN scale pre-folded).  bias: (Cout,) f32."""
    N, H, W, Cin = x.shape
    Cout = w.shape[-1]
    Ho = (H + 2 - 3) // stride + 1
    Wo = (W + 2 - 3) // stride + 1
    xp = jnp.pad(x, ((0, 0), (1, 1), (1, 1), (0, 0)))   # pad=1 (one small XLA pad, not im2col)
    Hp, Wp = H + 2, W + 2
    tn = Cout if Cout <= 512 else 512
    grid = (N, pl.cdiv(Cout, tn))
    return pl.pallas_call(
        _make_conv3x3_kernel(stride, Ho, Wo, Cin, relu),
        out_shape=jax.ShapeDtypeStruct((N, Ho, Wo, Cout), jnp.bfloat16),
        grid=grid,
        in_specs=[
            # padded image block is constant across the inner Cout axis -> fetched once per batch
            pl.BlockSpec((1, Hp, Wp, Cin), lambda n, j: (n, 0, 0, 0)),
            pl.BlockSpec((9, Cin, tn), lambda n, j: (0, 0, j)),
            pl.BlockSpec((1, tn), lambda n, j: (0, j)),
        ],
        out_specs=pl.BlockSpec((1, Ho, Wo, tn), lambda n, j: (n, 0, 0, j)),
        compiler_params=pltpu.CompilerParams(
            dimension_semantics=("parallel", "parallel"),
            vmem_limit_bytes=_vmem_limit_bytes()),
    )(xp, w, bias.reshape(1, Cout))


# ----------------------------------------------------------------------------
# Parameters (deterministic init, BN folded into matmul-ready bf16 weights once)
# ----------------------------------------------------------------------------
def _init_conv(key, cout, cin, kh, kw):
    n = kh * kw * cout
    return jax.random.normal(key, (cout, cin, kh, kw), jnp.float32) * math.sqrt(2.0 / n)


def _init_bn(key, c, eps=1e-5):
    # Inference-mode BN: running_mean=0, running_var=1 folded into (scale, bias).
    k1, k2 = jax.random.split(key)
    gamma = 1.0 + 0.1 * jax.random.normal(k1, (c,), jnp.float32)
    beta = 0.1 * jax.random.normal(k2, (c,), jnp.float32)
    scale = gamma / jnp.sqrt(1.0 + eps)
    bias = beta
    return scale, bias


def _fold_1x1(w, scale):
    # (Cout, Cin, 1, 1) -> (Cin, Cout) bf16 with BN scale folded (done once, not per forward).
    return (w[:, :, 0, 0].T * scale[None, :]).astype(jnp.bfloat16)


def _fold_3x3(w, scale):
    # (Cout, Cin, 3, 3) -> (9, Cin, Cout) bf16 with BN scale folded.
    cout, cin = w.shape[0], w.shape[1]
    wt = jnp.transpose(w, (2, 3, 1, 0)).reshape(9, cin, cout)
    return (wt * scale[None, None, :]).astype(jnp.bfloat16)


def make_bottleneck_params(key, inplanes, planes, stride=1):
    expansion = 4
    outplanes = planes * expansion
    keys = jax.random.split(key, 8)
    p = {"stride": stride}
    w1 = _init_conv(keys[0], planes, inplanes, 1, 1)
    s1, b1 = _init_bn(keys[1], planes)
    w2 = _init_conv(keys[2], planes, planes, 3, 3)
    s2, b2 = _init_bn(keys[3], planes)
    w3 = _init_conv(keys[4], outplanes, planes, 1, 1)
    s3, b3 = _init_bn(keys[5], outplanes)
    p["w1"], p["b1"] = _fold_1x1(w1, s1), b1
    p["w2"], p["b2"] = _fold_3x3(w2, s2), b2
    p["w3"], p["b3"] = _fold_1x1(w3, s3), b3
    if stride != 1 or inplanes != outplanes:        # downsample branch (conv1x1 + bn)
        wd = _init_conv(keys[6], outplanes, inplanes, 1, 1)
        sd, bd = _init_bn(keys[7], outplanes)
        p["down_w"], p["down_b"] = _fold_1x1(wd, sd), bd
    return p


# ----------------------------------------------------------------------------
# Forward pass (mirrors Bottleneck.forward)
# ----------------------------------------------------------------------------
def bottleneck_forward_nhwc(x, p):
    stride = p["stride"]
    if "down_w" in p:
        residual = conv1x1_bn(x, p["down_w"], p["down_b"], stride=stride, relu=False)
    else:
        residual = x
    out = conv1x1_bn(x, p["w1"], p["b1"], relu=True)                    # conv1+bn1+relu
    out = conv3x3_bn(out, p["w2"], p["b2"], stride=stride, relu=True)   # conv2+bn2+relu
    # conv3 + bn3 + residual add + relu fused in the matmul epilogue
    out = conv1x1_bn(out, p["w3"], p["b3"], residual=residual, relu=True)
    return out


def bottleneck_forward(x_nchw, p):
    x = jnp.transpose(x_nchw, (0, 2, 3, 1)).astype(jnp.bfloat16)
    y = bottleneck_forward_nhwc(x, p)
    return jnp.transpose(y, (0, 3, 1, 2)).astype(jnp.float32)


# ----------------------------------------------------------------------------
# Pure-JAX reference (same bf16 activation / f32 accumulation points) for validation
# ----------------------------------------------------------------------------
def _reference_bottleneck(x_nchw, p):
    def conv(x, w_hwio, bias, stride, pad, relu):
        y = jax.lax.conv_general_dilated(
            x, w_hwio, window_strides=(stride, stride),
            padding=((pad, pad), (pad, pad)),
            dimension_numbers=("NHWC", "HWIO", "NHWC"),
            preferred_element_type=jnp.float32)
        y = y + bias
        if relu:
            y = jnp.maximum(y, 0.0)
        return y.astype(jnp.bfloat16)

    x = jnp.transpose(x_nchw, (0, 2, 3, 1)).astype(jnp.bfloat16)
    stride = p["stride"]
    if "down_w" in p:
        wd = p["down_w"].reshape(1, 1, p["down_w"].shape[0], p["down_w"].shape[1])
        residual = conv(x, wd, p["down_b"], stride, 0, False)
    else:
        residual = x
    w1 = p["w1"].reshape(1, 1, p["w1"].shape[0], p["w1"].shape[1])
    out = conv(x, w1, p["b1"], 1, 0, True)
    w2 = p["w2"].reshape(3, 3, p["w2"].shape[1], p["w2"].shape[2])
    out = conv(out, w2, p["b2"], stride, 1, True)
    w3 = p["w3"].reshape(1, 1, p["w3"].shape[0], p["w3"].shape[1])
    y = jax.lax.conv_general_dilated(
        out, w3, window_strides=(1, 1), padding=((0, 0), (0, 0)),
        dimension_numbers=("NHWC", "HWIO", "NHWC"),
        preferred_element_type=jnp.float32)
    y = jnp.maximum(y + p["b3"] + residual.astype(jnp.float32), 0.0).astype(jnp.bfloat16)
    return jnp.transpose(y, (0, 3, 1, 2)).astype(jnp.float32)


if __name__ == "__main__":
    key = jax.random.PRNGKey(0)
    pkey, xkey = jax.random.split(key)

    # Bottleneck(inplanes=32, planes=16, stride=1) with a 1x1 downsample branch
    # (inplanes != planes * expansion), mirroring the PyTorch reference module.
    inplanes, planes, stride = 32, 16, 1
    params = make_bottleneck_params(pkey, inplanes, planes, stride=stride)
    x = jax.random.normal(xkey, (2, inplanes, 16, 16), jnp.float32)  # small NCHW input

    out = jax.block_until_ready(bottleneck_forward(x, params))
    assert out.shape == (2, planes * 4, 16, 16), out.shape
    assert out.dtype == jnp.float32
    assert bool(jnp.all(jnp.isfinite(out)))

    ref = jax.block_until_ready(_reference_bottleneck(x, params))
    err = float(jnp.max(jnp.abs(out - ref)) / (jnp.max(jnp.abs(ref)) + 1e-6))
    assert err < 2e-2, f"max relative error {err}"

    print("KERNEL_OK")
</pallas_src>

<mosaic_0001>
module attributes {stable_mosaic.version = 11 : i64} {
  func.func @kernel(%arg0: i32, %arg1: i32, %arg2: memref<512x32xbf16, #tpu.memory_space<vmem>>, %arg3: memref<32x64xbf16, #tpu.memory_space<vmem>>, %arg4: memref<1x64xf32, #tpu.memory_space<vmem>>, %arg5: memref<512x64xbf16, #tpu.memory_space<vmem>>) attributes {dimension_semantics = [#tpu.dimension_semantics<parallel>, #tpu.dimension_semantics<parallel>], iteration_bounds = array<i64: 1, 1>, scalar_prefetch = 0 : i64, scratch_operands = 0 : i64, tpu.core_type = #tpu.core_type<tc>, window_params = [{transform_indices = @transform_0, window_bounds = array<i64: 512, 32>}, {transform_indices = @transform_1, window_bounds = array<i64: 32, 64>}, {transform_indices = @transform_2, window_bounds = array<i64: 1, 64>}, {transform_indices = @transform_3, window_bounds = array<i64: 512, 64>}]} {
    %c0 = arith.constant 0 : index
    %c0_0 = arith.constant 0 : index
    %0 = vector.load %arg2[%c0, %c0_0] : memref<512x32xbf16, #tpu.memory_space<vmem>>, vector<512x32xbf16>
    %c0_1 = arith.constant 0 : index
    %c0_2 = arith.constant 0 : index
    %1 = vector.load %arg3[%c0_1, %c0_2] : memref<32x64xbf16, #tpu.memory_space<vmem>>, vector<32x64xbf16>
    %cst = arith.constant dense<0.000000e+00> : vector<512x64xf32>
    %2 = tpu.matmul %0, %1, %cst {dimension_numbers = #tpu.dot_dimension_numbers<[1], [0], [0], [1], [0, 0, 1, 1], [], []>} : vector<512x32xbf16>, vector<32x64xbf16>, vector<512x64xf32> -> vector<512x64xf32>
    %c0_3 = arith.constant 0 : index
    %c0_4 = arith.constant 0 : index
    %3 = vector.load %arg4[%c0_3, %c0_4] : memref<1x64xf32, #tpu.memory_space<vmem>>, vector<1x64xf32>
    %4 = vector.broadcast %3 : vector<1x64xf32> to vector<512x64xf32>
    %5 = arith.addf %2, %4 : vector<512x64xf32>
    %6 = arith.truncf %5 : vector<512x64xf32> to vector<512x64xbf16>
    %c0_5 = arith.constant 0 : index
    %c0_6 = arith.constant 0 : index
    %7 = vector.load %arg5[%c0_5, %c0_6] : memref<512x64xbf16, #tpu.memory_space<vmem>>, vector<512x64xbf16>
    tpu.vector_store %arg5[%c0_5, %c0_6], %6 {strides = array<i32>} : memref<512x64xbf16, #tpu.memory_space<vmem>>, vector<512x64xbf16>,
    return
  }
  func.func @transform_0(%arg0: i32, %arg1: i32) -> (i32, i32) {
    %c0_i32 = arith.constant 0 : i32
    %c0_i32_0 = arith.constant 0 : i32
    return %arg0, %c0_i32 : i32, i32
  }
  func.func @transform_1(%arg0: i32, %arg1: i32) -> (i32, i32) {
    %c0_i32 = arith.constant 0 : i32
    %c0_i32_0 = arith.constant 0 : i32
    return %c0_i32, %arg1 : i32, i32
  }
  func.func @transform_2(%arg0: i32, %arg1: i32) -> (i32, i32) {
    %c0_i32 = arith.constant 0 : i32
    %c0_i32_0 = arith.constant 0 : i32
    return %c0_i32, %arg1 : i32, i32
  }
  func.func @transform_3(%arg0: i32, %arg1: i32) -> (i32, i32) {
    %c0_i32 = arith.constant 0 : i32
    return %arg0, %arg1 : i32, i32
  }
}

</mosaic_0001>

<llo_original>
// kernel: matmul_bn_act.1
$region0: #{matmul_bn_act.1}
  #allocation0 [shape = 'u32[]', space=smem, size = 0x4, offset = 0x4, fixed_abs, tag = 'smem constant byte address 0x4 - core index']
  #allocation1 [shape = 'u32[144,128]{1,0:T(1,128)}', space=vmem, size = 0x12000, scoped, tag = 'internal scratch']
  %s0 = inlined_call_operand.vmem [shape: bf16[512,32], index: 0, kind: input, shape index: {}]
  %s1 = inlined_call_operand.vmem [shape: bf16[32,64], index: 1, kind: input, shape index: {}]
  %s2 = inlined_call_operand.vmem [shape: f32[1,64], index: 2, kind: input, shape index: {}]
  %s3 = inlined_call_operand.vmem [shape: bf16[512,64], index: 3, kind: output, shape index: {}]
  %s4 = sld [smem:[#allocation0]]
  $region22: #{matmul_bn_act.1} parent=0
    _
  %s6 = ssub.s32 1, %s4
  %s7 = scalar_select 0, %s6, %s4
  // Predicated region
  $region2: #{matmul_bn_act.1} parent=0 // pred_check
    _
  $region3: #{matmul_bn_act.1} parent=0 // pred_check_branch
    %9 = sbr.rel (0) target = $region5
  $region4: #{matmul_bn_act.1} parent=0 // pred_region
    _
  $region5: #{matmul_bn_act.1} parent=0 // pred_fallthru
    _
  // Predicated region
  $region6: #{matmul_bn_act.1} parent=0 // pred_check
    _
  $region7: #{matmul_bn_act.1} parent=0 // pred_check_branch
    %11 = sbr.rel (0) target = $region9
  $region8: #{matmul_bn_act.1} parent=0 // pred_region
    _
  $region9: #{matmul_bn_act.1} parent=0 // pred_fallthru
    _
  // Predicated region
  $region10: #{matmul_bn_act.1} parent=0 // pred_check
    _
  $region11: #{matmul_bn_act.1} parent=0 // pred_check_branch
    %13 = sbr.rel (0) target = $region13
  $region12: #{matmul_bn_act.1} parent=0 // pred_region
    _
  $region13: #{matmul_bn_act.1} parent=0 // pred_fallthru
    _
  %v15 = vld [vmem:[%s0] sm:$0xf]
  %v16 = vld [vmem:[%s0 + $0x4] sm:$0xf]
  %v17 = vld [vmem:[%s0 + $0x8] sm:$0xf]
  %v18 = vld [vmem:[%s0 + $0xc] sm:$0xf]
  %v19 = vld [vmem:[%s0 + $0x10] sm:$0xf]
  %v20 = vld [vmem:[%s0 + $0x14] sm:$0xf]
  %v21 = vld [vmem:[%s0 + $0x18] sm:$0xf]
  %v22 = vld [vmem:[%s0 + $0x1c] sm:$0xf]
  %v23 = vld [vmem:[%s0 + $0x20] sm:$0xf]
  %v24 = vld [vmem:[%s0 + $0x24] sm:$0xf]
  %v25 = vld [vmem:[%s0 + $0x28] sm:$0xf]
  %v26 = vld [vmem:[%s0 + $0x2c] sm:$0xf]
  %v27 = vld [vmem:[%s0 + $0x30] sm:$0xf]
  %v28 = vld [vmem:[%s0 + $0x34] sm:$0xf]
  %v29 = vld [vmem:[%s0 + $0x38] sm:$0xf]
  %v30 = vld [vmem:[%s0 + $0x3c] sm:$0xf]
  %v31 = vld [vmem:[%s0 + $0x40] sm:$0xf]
  %v32 = vld [vmem:[%s0 + $0x44] sm:$0xf]
  %v33 = vld [vmem:[%s0 + $0x48] sm:$0xf]
  %v34 = vld [vmem:[%s0 + $0x4c] sm:$0xf]
  %v35 = vld [vmem:[%s0 + $0x50] sm:$0xf]
  %v36 = vld [vmem:[%s0 + $0x54] sm:$0xf]
  %v37 = vld [vmem:[%s0 + $0x58] sm:$0xf]
  %v38 = vld [vmem:[%s0 + $0x5c] sm:$0xf]
  %v39 = vld [vmem:[%s0 + $0x60] sm:$0xf]
  %v40 = vld [vmem:[%s0 + $0x64] sm:$0xf]
  %v41 = vld [vmem:[%s0 + $0x68] sm:$0xf]
  %v42 = vld [vmem:[%s0 + $0x6c] sm:$0xf]
  %v43 = vld [vmem:[%s0 + $0x70] sm:$0xf]
  %v44 = vld [vmem:[%s0 + $0x74] sm:$0xf]
  %v45 = vld [vmem:[%s0 + $0x78] sm:$0xf]
  %v46 = vld [vmem:[%s0 + $0x7c] sm:$0xf]
  %v47 = vld [vmem:[%s0 + $0x80] sm:$0xf]
  %v48 = vld [vmem:[%s0 + $0x84] sm:$0xf]
  %v49 = vld [vmem:[%s0 + $0x88] sm:$0xf]
  %v50 = vld [vmem:[%s0 + $0x8c] sm:$0xf]
  %v51 = vld [vmem:[%s0 + $0x90] sm:$0xf]
  %v52 = vld [vmem:[%s0 + $0x94] sm:$0xf]
  %v53 = vld [vmem:[%s0 + $0x98] sm:$0xf]
  %v54 = vld [vmem:[%s0 + $0x9c] sm:$0xf]
  %v55 = vld [vmem:[%s0 + $0xa0] sm:$0xf]
  %v56 = vld [vmem:[%s0 + $0xa4] sm:$0xf]
  %v57 = vld [vmem:[%s0 + $0xa8] sm:$0xf]
  %v58 = vld [vmem:[%s0 + $0xac] sm:$0xf]
  %v59 = vld [vmem:[%s0 + $0xb0] sm:$0xf]
  %v60 = vld [vmem:[%s0 + $0xb4] sm:$0xf]
  %v61 = vld [vmem:[%s0 + $0xb8] sm:$0xf]
  %v62 = vld [vmem:[%s0 + $0xbc] sm:$0xf]
  %v63 = vld [vmem:[%s0 + $0xc0] sm:$0xf]
  %v64 = vld [vmem:[%s0 + $0xc4] sm:$0xf]
  %v65 = vld [vmem:[%s0 + $0xc8] sm:$0xf]
  %v66 = vld [vmem:[%s0 + $0xcc] sm:$0xf]
  %v67 = vld [vmem:[%s0 + $0xd0] sm:$0xf]
  %v68 = vld [vmem:[%s0 + $0xd4] sm:$0xf]
  %v69 = vld [vmem:[%s0 + $0xd8] sm:$0xf]
  %v70 = vld [vmem:[%s0 + $0xdc] sm:$0xf]
  %v71 = vld [vmem:[%s0 + $0xe0] sm:$0xf]
  %v72 = vld [vmem:[%s0 + $0xe4] sm:$0xf]
  %v73 = vld [vmem:[%s0 + $0xe8] sm:$0xf]
  %v74 = vld [vmem:[%s0 + $0xec] sm:$0xf]
  %v75 = vld [vmem:[%s0 + $0xf0] sm:$0xf]
  %v76 = vld [vmem:[%s0 + $0xf4] sm:$0xf]
  %v77 = vld [vmem:[%s0 + $0xf8] sm:$0xf]
  %v78 = vld [vmem:[%s0 + $0xfc] sm:$0xf]
  %v79 = vld [vmem:[%s1] sm:$0xf]
  %v80 = vld [vmem:[%s1 + $0x4] sm:$0xf]
  %v81 = vld [vmem:[%s1 + $0x8] sm:$0xf]
  %v82 = vld [vmem:[%s1 + $0xc] sm:$0xf]
  %v83 = vld [vmem:[%s2] sm:$0x1]
  %v85 = vlaneseq
  %v86 = vshrl.u32 %v85, 7
  %v87 = vsub.s32 0, %v86
  %v88 = vrot.slane %v83, %v87
  %v154 = vunpack.c.l.b16 %v15
  %v155 = vunpack.c.l.b16 %v16
  %v156 = vunpack.c.l.b16 %v17
  %v157 = vunpack.c.l.b16 %v18
  %v158 = vunpack.c.l.b16 %v19
  %v159 = vunpack.c.l.b16 %v20
  %v160 = vunpack.c.l.b16 %v21
  %v161 = vunpack.c.l.b16 %v22
  %v162 = vunpack.c.l.b16 %v23
  %v163 = vunpack.c.l.b16 %v24
  %v164 = vunpack.c.l.b16 %v25
  %v165 = vunpack.c.l.b16 %v26
  %v166 = vunpack.c.l.b16 %v27
  %v167 = vunpack.c.l.b16 %v28
  %v168 = vunpack.c.l.b16 %v29
  %v169 = vunpack.c.l.b16 %v30
  %v170 = vunpack.c.l.b16 %v31
  %v171 = vunpack.c.l.b16 %v32
  %v172 = vunpack.c.l.b16 %v33
  %v173 = vunpack.c.l.b16 %v34
  %v174 = vunpack.c.l.b16 %v35
  %v175 = vunpack.c.l.b16 %v36
  %v176 = vunpack.c.l.b16 %v37
  %v177 = vunpack.c.l.b16 %v38
  %v178 = vunpack.c.l.b16 %v39
  %v179 = vunpack.c.l.b16 %v40
  %v180 = vunpack.c.l.b16 %v41
  %v181 = vunpack.c.l.b16 %v42
  %v182 = vunpack.c.l.b16 %v43
  %v183 = vunpack.c.l.b16 %v44
  %v184 = vunpack.c.l.b16 %v45
  %v185 = vunpack.c.l.b16 %v46
  %v186 = vunpack.c.l.b16 %v47
  %v187 = vunpack.c.l.b16 %v48
  %v188 = vunpack.c.l.b16 %v49
  %v189 = vunpack.c.l.b16 %v50
  %v190 = vunpack.c.l.b16 %v51
  %v191 = vunpack.c.l.b16 %v52
  %v192 = vunpack.c.l.b16 %v53
  %v193 = vunpack.c.l.b16 %v54
  %v194 = vunpack.c.l.b16 %v55
  %v195 = vunpack.c.l.b16 %v56
  %v196 = vunpack.c.l.b16 %v57
  %v197 = vunpack.c.l.b16 %v58
  %v198 = vunpack.c.l.b16 %v59
  %v199 = vunpack.c.l.b16 %v60
  %v200 = vunpack.c.l.b16 %v61
  %v201 = vunpack.c.l.b16 %v62
  %v202 = vunpack.c.l.b16 %v63
  %v203 = vunpack.c.l.b16 %v64
  %v204 = vunpack.c.l.b16 %v65
  %v205 = vunpack.c.l.b16 %v66
  %v206 = vunpack.c.l.b16 %v67
  %v207 = vunpack.c.l.b16 %v68
  %v208 = vunpack.c.l.b16 %v69
  %v209 = vunpack.c.l.b16 %v70
  %v210 = vunpack.c.l.b16 %v71
  %v211 = vunpack.c.l.b16 %v72
  %v212 = vunpack.c.l.b16 %v73
  %v213 = vunpack.c.l.b16 %v74
  %v214 = vunpack.c.l.b16 %v75
  %v215 = vunpack.c.l.b16 %v76
  %v216 = vunpack.c.l.b16 %v77
  %v217 = vunpack.c.l.b16 %v78
  %v218 = vpack.c.b16 %v155, %v154
  %v219 = vpack.c.b16 %v157, %v156
  %v220 = vpack.c.b16 %v159, %v158
  %v221 = vpack.c.b16 %v161, %v160
  %v222 = vpack.c.b16 %v163, %v162
  %v223 = vpack.c.b16 %v165, %v164
  %v224 = vpack.c.b16 %v167, %v166
  %v225 = vpack.c.b16 %v169, %v168
  %v226 = vpack.c.b16 %v171, %v170
  %v227 = vpack.c.b16 %v173, %v172
  %v228 = vpack.c.b16 %v175, %v174
  %v229 = vpack.c.b16 %v177, %v176
  %v230 = vpack.c.b16 %v179, %v178
  %v231 = vpack.c.b16 %v181, %v180
  %v232 = vpack.c.b16 %v183, %v182
  %v233 = vpack.c.b16 %v185, %v184
  %v234 = vpack.c.b16 %v187, %v186
  %v235 = vpack.c.b16 %v189, %v188
  %v236 = vpack.c.b16 %v191, %v190
  %v237 = vpack.c.b16 %v193, %v192
  %v238 = vpack.c.b16 %v195, %v194
  %v239 = vpack.c.b16 %v197, %v196
  %v240 = vpack.c.b16 %v199, %v198
  %v241 = vpack.c.b16 %v201, %v200
  %v242 = vpack.c.b16 %v203, %v202
  %v243 = vpack.c.b16 %v205, %v204
  %v244 = vpack.c.b16 %v207, %v206
  %v245 = vpack.c.b16 %v209, %v208
  %v246 = vpack.c.b16 %v211, %v210
  %v247 = vpack.c.b16 %v213, %v212
  %v248 = vpack.c.b16 %v215, %v214
  %v249 = vpack.c.b16 %v217, %v216
  %v254 = vunpack.c.l.b16 %v79
  %v255 = vunpack.c.l.b16 %v80
  %v256 = vunpack.c.l.b16 %v81
  %v257 = vunpack.c.l.b16 %v82
  %v258 = vpack.c.b16 %v255, %v254
  %v259 = vpack.c.b16 %v257, %v256
  %vm262 = vcmask 261120
  %v264 = vsel %vm262, %v218, 0
  %v267 = vsel %vm262, %v219, 0
  %v270 = vsel %vm262, %v220, 0
  %v273 = vsel %vm262, %v221, 0
  %v276 = vsel %vm262, %v222, 0
  %v279 = vsel %vm262, %v223, 0
  %v282 = vsel %vm262, %v224, 0
  %v285 = vsel %vm262, %v225, 0
  %v288 = vsel %vm262, %v226, 0
  %v291 = vsel %vm262, %v227, 0
  %v294 = vsel %vm262, %v228, 0
  %v297 = vsel %vm262, %v229, 0
  %v300 = vsel %vm262, %v230, 0
  %v303 = vsel %vm262, %v231, 0
  %v306 = vsel %vm262, %v232, 0
  %v309 = vsel %vm262, %v233, 0
  %v312 = vsel %vm262, %v234, 0
  %v315 = vsel %vm262, %v235, 0
  %v318 = vsel %vm262, %v236, 0
  %v321 = vsel %vm262, %v237, 0
  %v324 = vsel %vm262, %v238, 0
  %v327 = vsel %vm262, %v239, 0
  %v330 = vsel %vm262, %v240, 0
  %v333 = vsel %vm262, %v241, 0
  %v336 = vsel %vm262, %v242, 0
  %v339 = vsel %vm262, %v243, 0
  %v342 = vsel %vm262, %v244, 0
  %v345 = vsel %vm262, %v245, 0
  %v348 = vsel %vm262, %v246, 0
  %v351 = vsel %vm262, %v247, 0
  %v354 = vsel %vm262, %v248, 0
  %v357 = vsel %vm262, %v249, 0
  %359 = vmatprep.subr.bf16.mxu0 0
  %360 = vmatpush1.bf16.msra.mxu0 0
  %361 = vmatprep.subr.bf16.mxu0 0
  %362 = vmatpush1.bf16.msra.mxu0 0
  %363 = vmatprep.subr.bf16.mxu0 0
  %364 = vmatpush1.bf16.msra.mxu0 0
  %365 = vmatprep.subr.bf16.mxu0 0
  %366 = vmatpush1.bf16.msra.mxu0 0
  %367 = vmatprep.subr.bf16.mxu0 0
  %368 = vmatpush1.bf16.msra.mxu0 0
  %369 = vmatprep.subr.bf16.mxu0 0
  %370 = vmatpush1.bf16.msra.mxu0 0
  %371 = vmatprep.subr.bf16.mxu0 0
  %372 = vmatpush1.bf16.msra.mxu0 %v259
  %373 = vmatprep.subr.bf16.mxu0 0
  %374 = vmatpush1.bf16.msra.mxu0 %v258
  %375 = vmatprep.subr.bf16.mxu0 0
  %376 = vmatpush2.bf16.msra.mxu0 0
  %377 = vmatprep.subr.bf16.mxu0 0
  %378 = vmatpush2.bf16.msra.mxu0 0
  %379 = vmatprep.subr.bf16.mxu0 0
  %380 = vmatpush2.bf16.msra.mxu0 0
  %381 = vmatprep.subr.bf16.mxu0 0
  %382 = vmatpush2.bf16.msra.mxu0 0
  %383 = vmatprep.subr.bf16.mxu0 0
  %384 = vmatpush2.bf16.msra.mxu0 0
  %385 = vmatprep.subr.bf16.mxu0 0
  %386 = vmatpush2.bf16.msra.mxu0 0
  %387 = vmatprep.subr.bf16.mxu0 0
  %388 = vmatpush2.bf16.msra.mxu0 0
  %389 = vmatprep.subr.bf16.mxu0 0
  %390 = vmatpush2.bf16.msra.mxu0 0
  %391 = vmatprep.mubr.bf16.mxu0 0
  %392 = vmatmul.mubr.bf16.gmra.mxu0 %v264
  %v393 = vpop.f32.mrf.mxu0
  %v394 = vadd.f32 %v88, %v393
  %v395 = vpop.f32.mrf.mxu0
  %v396 = vpop.f32.mrf.mxu0
  %v397 = vadd.f32 %v88, %v396
  %v398 = vpop.f32.mrf.mxu0
  %399 = vmatprep.mubr.bf16.mxu0 0
  %400 = vmatmul.mubr.bf16.gmra.mxu0 %v267
  %v401 = vpop.f32.mrf.mxu0
  %v402 = vadd.f32 %v88, %v401
  %v403 = vpop.f32.mrf.mxu0
  %v404 = vpop.f32.mrf.mxu0
  %v405 = vadd.f32 %v88, %v404
  %v406 = vpop.f32.mrf.mxu0
  %407 = vmatprep.mubr.bf16.mxu0 0
  %408 = vmatmul.mubr.bf16.gmra.mxu0 %v270
  %v409 = vpop.f32.mrf.mxu0
  %v410 = vadd.f32 %v88, %v409
  %v411 = vpop.f32.mrf.mxu0
  %v412 = vpop.f32.mrf.mxu0
  %v413 = vadd.f32 %v88, %v412
  %v414 = vpop.f32.mrf.mxu0
  %415 = vmatprep.mubr.bf16.mxu0 0
  %416 = vmatmul.mubr.bf16.gmra.mxu0 %v273
  %v417 = vpop.f32.mrf.mxu0
  %v418 = vadd.f32 %v88, %v417
  %v419 = vpop.f32.mrf.mxu0
  %v420 = vpop.f32.mrf.mxu0
  %v421 = vadd.f32 %v88, %v420
  %v422 = vpop.f32.mrf.mxu0
  %423 = vmatprep.mubr.bf16.mxu0 0
  %424 = vmatmul.mubr.bf16.gmra.mxu0 %v276
  %v425 = vpop.f32.mrf.mxu0
  %v426 = vadd.f32 %v88, %v425
  %v427 = vpop.f32.mrf.mxu0
  %v428 = vpop.f32.mrf.mxu0
  %v429 = vadd.f32 %v88, %v428
  %v430 = vpop.f32.mrf.mxu0
  %431 = vmatprep.mubr.bf16.mxu0 0
  %432 = vmatmul.mubr.bf16.gmra.mxu0 %v279
  %v433 = vpop.f32.mrf.mxu0
  %v434 = vadd.f32 %v88, %v433
  %v435 = vpop.f32.mrf.mxu0
  %v436 = vpop.f32.mrf.mxu0
  %v437 = vadd.f32 %v88, %v436
  %v438 = vpop.f32.mrf.mxu0
  %439 = vmatprep.mubr.bf16.mxu0 0
  %440 = vmatmul.mubr.bf16.gmra.mxu0 %v282
  %v441 = vpop.f32.mrf.mxu0
  %v442 = vadd.f32 %v88, %v441
  %v443 = vpop.f32.mrf.mxu0
  %v444 = vpop.f32.mrf.mxu0
  %v445 = vadd.f32 %v88, %v444
  %v446 = vpop.f32.mrf.mxu0
  %447 = vmatprep.mubr.bf16.mxu0 0
  %448 = vmatmul.mubr.bf16.gmra.mxu0 %v285
  %v449 = vpop.f32.mrf.mxu0
  %v450 = vadd.f32 %v88, %v449
  %v451 = vpop.f32.mrf.mxu0
  %v452 = vpop.f32.mrf.mxu0
  %v453 = vadd.f32 %v88, %v452
  %v454 = vpop.f32.mrf.mxu0
  %455 = vmatprep.mubr.bf16.mxu0 0
  %456 = vmatmul.mubr.bf16.gmra.mxu0 %v288
  %v457 = vpop.f32.mrf.mxu0
  %v458 = vadd.f32 %v88, %v457
  %v459 = vpop.f32.mrf.mxu0
  %v460 = vpop.f32.mrf.mxu0
  %v461 = vadd.f32 %v88, %v460
  %v462 = vpop.f32.mrf.mxu0
  %463 = vmatprep.mubr.bf16.mxu0 0
  %464 = vmatmul.mubr.bf16.gmra.mxu0 %v291
  %v465 = vpop.f32.mrf.mxu0
  %v466 = vadd.f32 %v88, %v465
  %v467 = vpop.f32.mrf.mxu0
  %v468 = vpop.f32.mrf.mxu0
  %v469 = vadd.f32 %v88, %v468
  %v470 = vpop.f32.mrf.mxu0
  %471 = vmatprep.mubr.bf16.mxu0 0
  %472 = vmatmul.mubr.bf16.gmra.mxu0 %v294
  %v473 = vpop.f32.mrf.mxu0
  %v474 = vadd.f32 %v88, %v473
  %v475 = vpop.f32.mrf.mxu0
  %v476 = vpop.f32.mrf.mxu0
  %v477 = vadd.f32 %v88, %v476
  %v478 = vpop.f32.mrf.mxu0
  %479 = vmatprep.mubr.bf16.mxu0 0
  %480 = vmatmul.mubr.bf16.gmra.mxu0 %v297
  %v481 = vpop.f32.mrf.mxu0
  %v482 = vadd.f32 %v88, %v481
  %v483 = vpop.f32.mrf.mxu0
  %v484 = vpop.f32.mrf.mxu0
  %v485 = vadd.f32 %v88, %v484
  %v486 = vpop.f32.mrf.mxu0
  %487 = vmatprep.mubr.bf16.mxu0 0
  %488 = vmatmul.mubr.bf16.gmra.mxu0 %v300
  %v489 = vpop.f32.mrf.mxu0
  %v490 = vadd.f32 %v88, %v489
  %v491 = vpop.f32.mrf.mxu0
  %v492 = vpop.f32.mrf.mxu0
  %v493 = vadd.f32 %v88, %v492
  %v494 = vpop.f32.mrf.mxu0
  %495 = vmatprep.mubr.bf16.mxu0 0
  %496 = vmatmul.mubr.bf16.gmra.mxu0 %v303
  %v497 = vpop.f32.mrf.mxu0
  %v498 = vadd.f32 %v88, %v497
  %v499 = vpop.f32.mrf.mxu0
  %v500 = vpop.f32.mrf.mxu0
  %v501 = vadd.f32 %v88, %v500
  %v502 = vpop.f32.mrf.mxu0
  %503 = vmatprep.mubr.bf16.mxu0 0
  %504 = vmatmul.mubr.bf16.gmra.mxu0 %v306
  %v505 = vpop.f32.mrf.mxu0
  %v506 = vadd.f32 %v88, %v505
  %v507 = vpop.f32.mrf.mxu0
  %v508 = vpop.f32.mrf.mxu0
  %v509 = vadd.f32 %v88, %v508
  %v510 = vpop.f32.mrf.mxu0
  %511 = vmatprep.mubr.bf16.mxu0 0
  %512 = vmatmul.mubr.bf16.gmra.mxu0 %v309
  %v513 = vpop.f32.mrf.mxu0
  %v514 = vadd.f32 %v88, %v513
  %v515 = vpop.f32.mrf.mxu0
  %v516 = vpop.f32.mrf.mxu0
  %v517 = vadd.f32 %v88, %v516
  %v518 = vpop.f32.mrf.mxu0
  %519 = vmatprep.mubr.bf16.mxu0 0
  %520 = vmatmul.mubr.bf16.gmra.mxu0 %v312
  %v521 = vpop.f32.mrf.mxu0
  %v522 = vadd.f32 %v88, %v521
  %v523 = vpop.f32.mrf.mxu0
  %v524 = vpop.f32.mrf.mxu0
  %v525 = vadd.f32 %v88, %v524
  %v526 = vpop.f32.mrf.mxu0
  %527 = vmatprep.mubr.bf16.mxu0 0
  %528 = vmatmul.mubr.bf16.gmra.mxu0 %v315
  %v529 = vpop.f32.mrf.mxu0
  %v530 = vadd.f32 %v88, %v529
  %v531 = vpop.f32.mrf.mxu0
  %v532 = vpop.f32.mrf.mxu0
  %v533 = vadd.f32 %v88, %v532
  %v534 = vpop.f32.mrf.mxu0
  %535 = vmatprep.mubr.bf16.mxu0 0
  %536 = vmatmul.mubr.bf16.gmra.mxu0 %v318
  %v537 = vpop.f32.mrf.mxu0
  %v538 = vadd.f32 %v88, %v537
  %v539 = vpop.f32.mrf.mxu0
  %v540 = vpop.f32.mrf.mxu0
  %v541 = vadd.f32 %v88, %v540
  %v542 = vpop.f32.mrf.mxu0
  %543 = vmatprep.mubr.bf16.mxu0 0
  %544 = vmatmul.mubr.bf16.gmra.mxu0 %v321
  %v545 = vpop.f32.mrf.mxu0
  %v546 = vadd.f32 %v88, %v545
  %v547 = vpop.f32.mrf.mxu0
  %v548 = vpop.f32.mrf.mxu0
  %v549 = vadd.f32 %v88, %v548
  %v550 = vpop.f32.mrf.mxu0
  %551 = vmatprep.mubr.bf16.mxu0 0
  %552 = vmatmul.mubr.bf16.gmra.mxu0 %v324
  %v553 = vpop.f32.mrf.mxu0
  %v554 = vadd.f32 %v88, %v553
  %v555 = vpop.f32.mrf.mxu0
  %v556 = vpop.f32.mrf.mxu0
  %v557 = vadd.f32 %v88, %v556
  %v558 = vpop.f32.mrf.mxu0
  %559 = vmatprep.mubr.bf16.mxu0 0
  %560 = vmatmul.mubr.bf16.gmra.mxu0 %v327
  %v561 = vpop.f32.mrf.mxu0
  %v562 = vadd.f32 %v88, %v561
  %v563 = vpop.f32.mrf.mxu0
  %v564 = vpop.f32.mrf.mxu0
  %v565 = vadd.f32 %v88, %v564
  %v566 = vpop.f32.mrf.mxu0
  %567 = vmatprep.mubr.bf16.mxu0 0
  %568 = vmatmul.mubr.bf16.gmra.mxu0 %v330
  %v569 = vpop.f32.mrf.mxu0
  %v570 = vadd.f32 %v88, %v569
  %v571 = vpop.f32.mrf.mxu0
  %v572 = vpop.f32.mrf.mxu0
  %v573 = vadd.f32 %v88, %v572
  %v574 = vpop.f32.mrf.mxu0
  %575 = vmatprep.mubr.bf16.mxu0 0
  %576 = vmatmul.mubr.bf16.gmra.mxu0 %v333
  %v577 = vpop.f32.mrf.mxu0
  %v578 = vadd.f32 %v88, %v577
  %v579 = vpop.f32.mrf.mxu0
  %v580 = vpop.f32.mrf.mxu0
  %v581 = vadd.f32 %v88, %v580
  %v582 = vpop.f32.mrf.mxu0
  %583 = vmatprep.mubr.bf16.mxu0 0
  %584 = vmatmul.mubr.bf16.gmra.mxu0 %v336
  %v585 = vpop.f32.mrf.mxu0
  %v586 = vadd.f32 %v88, %v585
  %v587 = vpop.f32.mrf.mxu0
  %v588 = vpop.f32.mrf.mxu0
  %v589 = vadd.f32 %v88, %v588
  %v590 = vpop.f32.mrf.mxu0
  %591 = vmatprep.mubr.bf16.mxu0 0
  %592 = vmatmul.mubr.bf16.gmra.mxu0 %v339
  %v593 = vpop.f32.mrf.mxu0
  %v594 = vadd.f32 %v88, %v593
  %v595 = vpop.f32.mrf.mxu0
  %v596 = vpop.f32.mrf.mxu0
  %v597 = vadd.f32 %v88, %v596
  %v598 = vpop.f32.mrf.mxu0
  %599 = vmatprep.mubr.bf16.mxu0 0
  %600 = vmatmul.mubr.bf16.gmra.mxu0 %v342
  %v601 = vpop.f32.mrf.mxu0
  %v602 = vadd.f32 %v88, %v601
  %v603 = vpop.f32.mrf.mxu0
  %v604 = vpop.f32.mrf.mxu0
  %v605 = vadd.f32 %v88, %v604
  %v606 = vpop.f32.mrf.mxu0
  %607 = vmatprep.mubr.bf16.mxu0 0
  %608 = vmatmul.mubr.bf16.gmra.mxu0 %v345
  %v609 = vpop.f32.mrf.mxu0
  %v610 = vadd.f32 %v88, %v609
  %v611 = vpop.f32.mrf.mxu0
  %v612 = vpop.f32.mrf.mxu0
  %v613 = vadd.f32 %v88, %v612
  %v614 = vpop.f32.mrf.mxu0
  %615 = vmatprep.mubr.bf16.mxu0 0
  %616 = vmatmul.mubr.bf16.gmra.mxu0 %v348
  %v617 = vpop.f32.mrf.mxu0
  %v618 = vadd.f32 %v88, %v617
  %v619 = vpop.f32.mrf.mxu0
  %v620 = vpop.f32.mrf.mxu0
  %v621 = vadd.f32 %v88, %v620
  %v622 = vpop.f32.mrf.mxu0
  %623 = vmatprep.mubr.bf16.mxu0 0
  %624 = vmatmul.mubr.bf16.gmra.mxu0 %v351
  %v625 = vpop.f32.mrf.mxu0
  %v626 = vadd.f32 %v88, %v625
  %v627 = vpop.f32.mrf.mxu0
  %v628 = vpop.f32.mrf.mxu0
  %v629 = vadd.f32 %v88, %v628
  %v630 = vpop.f32.mrf.mxu0
  %631 = vmatprep.mubr.bf16.mxu0 0
  %632 = vmatmul.mubr.bf16.gmra.mxu0 %v354
  %v633 = vpop.f32.mrf.mxu0
  %v634 = vadd.f32 %v88, %v633
  %v635 = vpop.f32.mrf.mxu0
  %v636 = vpop.f32.mrf.mxu0
  %v637 = vadd.f32 %v88, %v636
  %v638 = vpop.f32.mrf.mxu0
  %639 = vmatprep.mubr.bf16.mxu0 0
  %640 = vmatmul.mubr.bf16.gmra.mxu0 %v357
  %v641 = vpop.f32.mrf.mxu0
  %v642 = vadd.f32 %v88, %v641
  %v643 = vpop.f32.mrf.mxu0
  %v644 = vpop.f32.mrf.mxu0
  %v645 = vadd.f32 %v88, %v644
  %v646 = vpop.f32.mrf.mxu0
  %647 = vdwg.mxu0
  %v648 = vpack.c.bf16 %v397, %v394
  %v649 = vpack.c.bf16 %v405, %v402
  %v650 = vpack.c.bf16 %v413, %v410
  %v651 = vpack.c.bf16 %v421, %v418
  %v652 = vpack.c.bf16 %v429, %v426
  %v653 = vpack.c.bf16 %v437, %v434
  %v654 = vpack.c.bf16 %v445, %v442
  %v655 = vpack.c.bf16 %v453, %v450
  %v656 = vpack.c.bf16 %v461, %v458
  %v657 = vpack.c.bf16 %v469, %v466
  %v658 = vpack.c.bf16 %v477, %v474
  %v659 = vpack.c.bf16 %v485, %v482
  %v660 = vpack.c.bf16 %v493, %v490
  %v661 = vpack.c.bf16 %v501, %v498
  %v662 = vpack.c.bf16 %v509, %v506
  %v663 = vpack.c.bf16 %v517, %v514
  %v664 = vpack.c.bf16 %v525, %v522
  %v665 = vpack.c.bf16 %v533, %v530
  %v666 = vpack.c.bf16 %v541, %v538
  %v667 = vpack.c.bf16 %v549, %v546
  %v668 = vpack.c.bf16 %v557, %v554
  %v669 = vpack.c.bf16 %v565, %v562
  %v670 = vpack.c.bf16 %v573, %v570
  %v671 = vpack.c.bf16 %v581, %v578
  %v672 = vpack.c.bf16 %v589, %v586
  %v673 = vpack.c.bf16 %v597, %v594
  %v674 = vpack.c.bf16 %v605, %v602
  %v675 = vpack.c.bf16 %v613, %v610
  %v676 = vpack.c.bf16 %v621, %v618
  %v677 = vpack.c.bf16 %v629, %v626
  %v678 = vpack.c.bf16 %v637, %v634
  %v679 = vpack.c.bf16 %v645, %v642
  %v712 = vunpack.c.l.b16 %v648
  %v713 = vunpack.c.h.b16 %v648
  %v714 = vunpack.c.l.b16 %v649
  %v715 = vunpack.c.h.b16 %v649
  %v716 = vunpack.c.l.b16 %v650
  %v717 = vunpack.c.h.b16 %v650
  %v718 = vunpack.c.l.b16 %v651
  %v719 = vunpack.c.h.b16 %v651
  %v720 = vunpack.c.l.b16 %v652
  %v721 = vunpack.c.h.b16 %v652
  %v722 = vunpack.c.l.b16 %v653
  %v723 = vunpack.c.h.b16 %v653
  %v724 = vunpack.c.l.b16 %v654
  %v725 = vunpack.c.h.b16 %v654
  %v726 = vunpack.c.l.b16 %v655
  %v727 = vunpack.c.h.b16 %v655
  %v728 = vunpack.c.l.b16 %v656
  %v729 = vunpack.c.h.b16 %v656
  %v730 = vunpack.c.l.b16 %v657
  %v731 = vunpack.c.h.b16 %v657
  %v732 = vunpack.c.l.b16 %v658
  %v733 = vunpack.c.h.b16 %v658
  %v734 = vunpack.c.l.b16 %v659
  %v735 = vunpack.c.h.b16 %v659
  %v736 = vunpack.c.l.b16 %v660
  %v737 = vunpack.c.h.b16 %v660
  %v738 = vunpack.c.l.b16 %v661
  %v739 = vunpack.c.h.b16 %v661
  %v740 = vunpack.c.l.b16 %v662
  %v741 = vunpack.c.h.b16 %v662
  %v742 = vunpack.c.l.b16 %v663
  %v743 = vunpack.c.h.b16 %v663
  %v744 = vunpack.c.l.b16 %v664
  %v745 = vunpack.c.h.b16 %v664
  %v746 = vunpack.c.l.b16 %v665
  %v747 = vunpack.c.h.b16 %v665
  %v748 = vunpack.c.l.b16 %v666
  %v749 = vunpack.c.h.b16 %v666
  %v750 = vunpack.c.l.b16 %v667
  %v751 = vunpack.c.h.b16 %v667
  %v752 = vunpack.c.l.b16 %v668
  %v753 = vunpack.c.h.b16 %v668
  %v754 = vunpack.c.l.b16 %v669
  %v755 = vunpack.c.h.b16 %v669
  %v756 = vunpack.c.l.b16 %v670
  %v757 = vunpack.c.h.b16 %v670
  %v758 = vunpack.c.l.b16 %v671
  %v759 = vunpack.c.h.b16 %v671
  %v760 = vunpack.c.l.b16 %v672
  %v761 = vunpack.c.h.b16 %v672
  %v762 = vunpack.c.l.b16 %v673
  %v763 = vunpack.c.h.b16 %v673
  %v764 = vunpack.c.l.b16 %v674
  %v765 = vunpack.c.h.b16 %v674
  %v766 = vunpack.c.l.b16 %v675
  %v767 = vunpack.c.h.b16 %v675
  %v768 = vunpack.c.l.b16 %v676
  %v769 = vunpack.c.h.b16 %v676
  %v770 = vunpack.c.l.b16 %v677
  %v771 = vunpack.c.h.b16 %v677
  %v772 = vunpack.c.l.b16 %v678
  %v773 = vunpack.c.h.b16 %v678
  %v774 = vunpack.c.l.b16 %v679
  %v775 = vunpack.c.h.b16 %v679
  %v776 = vpack.c.b16 %v712, %v712
  %v777 = vpack.c.b16 %v713, %v713
  %v778 = vpack.c.b16 %v714, %v714
  %v779 = vpack.c.b16 %v715, %v715
  %v780 = vpack.c.b16 %v716, %v716
  %v781 = vpack.c.b16 %v717, %v717
  %v782 = vpack.c.b16 %v718, %v718
  %v783 = vpack.c.b16 %v719, %v719
  %v784 = vpack.c.b16 %v720, %v720
  %v785 = vpack.c.b16 %v721, %v721
  %v786 = vpack.c.b16 %v722, %v722
  %v787 = vpack.c.b16 %v723, %v723
  %v788 = vpack.c.b16 %v724, %v724
  %v789 = vpack.c.b16 %v725, %v725
  %v790 = vpack.c.b16 %v726, %v726
  %v791 = vpack.c.b16 %v727, %v727
  %v792 = vpack.c.b16 %v728, %v728
  %v793 = vpack.c.b16 %v729, %v729
  %v794 = vpack.c.b16 %v730, %v730
  %v795 = vpack.c.b16 %v731, %v731
  %v796 = vpack.c.b16 %v732, %v732
  %v797 = vpack.c.b16 %v733, %v733
  %v798 = vpack.c.b16 %v734, %v734
  %v799 = vpack.c.b16 %v735, %v735
  %v800 = vpack.c.b16 %v736, %v736
  %v801 = vpack.c.b16 %v737, %v737
  %v802 = vpack.c.b16 %v738, %v738
  %v803 = vpack.c.b16 %v739, %v739
  %v804 = vpack.c.b16 %v740, %v740
  %v805 = vpack.c.b16 %v741, %v741
  %v806 = vpack.c.b16 %v742, %v742
  %v807 = vpack.c.b16 %v743, %v743
  %v808 = vpack.c.b16 %v744, %v744
  %v809 = vpack.c.b16 %v745, %v745
  %v810 = vpack.c.b16 %v746, %v746
  %v811 = vpack.c.b16 %v747, %v747
  %v812 = vpack.c.b16 %v748, %v748
  %v813 = vpack.c.b16 %v749, %v749
  %v814 = vpack.c.b16 %v750, %v750
  %v815 = vpack.c.b16 %v751, %v751
  %v816 = vpack.c.b16 %v752, %v752
  %v817 = vpack.c.b16 %v753, %v753
  %v818 = vpack.c.b16 %v754, %v754
  %v819 = vpack.c.b16 %v755, %v755
  %v820 = vpack.c.b16 %v756, %v756
  %v821 = vpack.c.b16 %v757, %v757
  %v822 = vpack.c.b16 %v758, %v758
  %v823 = vpack.c.b16 %v759, %v759
  %v824 = vpack.c.b16 %v760, %v760
  %v825 = vpack.c.b16 %v761, %v761
  %v826 = vpack.c.b16 %v762, %v762
  %v827 = vpack.c.b16 %v763, %v763
  %v828 = vpack.c.b16 %v764, %v764
  %v829 = vpack.c.b16 %v765, %v765
  %v830 = vpack.c.b16 %v766, %v766
  %v831 = vpack.c.b16 %v767, %v767
  %v832 = vpack.c.b16 %v768, %v768
  %v833 = vpack.c.b16 %v769, %v769
  %v834 = vpack.c.b16 %v770, %v770
  %v835 = vpack.c.b16 %v771, %v771
  %v836 = vpack.c.b16 %v772, %v772
  %v837 = vpack.c.b16 %v773, %v773
  %v838 = vpack.c.b16 %v774, %v774
  %v839 = vpack.c.b16 %v775, %v775
  %vm904 = vcmask 519168
  %905 = vst.msk [vmem:[%s3] sm:$0xf] %vm904, %v776
  %906 = vst.msk [vmem:[%s3 + $0x4] sm:$0xf] %vm904, %v777
  %907 = vst.msk [vmem:[%s3 + $0x8] sm:$0xf] %vm904, %v778
  %908 = vst.msk [vmem:[%s3 + $0xc] sm:$0xf] %vm904, %v779
  %909 = vst.msk [vmem:[%s3 + $0x10] sm:$0xf] %vm904, %v780
  %910 = vst.msk [vmem:[%s3 + $0x14] sm:$0xf] %vm904, %v781
  %911 = vst.msk [vmem:[%s3 + $0x18] sm:$0xf] %vm904, %v782
  %912 = vst.msk [vmem:[%s3 + $0x1c] sm:$0xf] %vm904, %v783
  %913 = vst.msk [vmem:[%s3 + $0x20] sm:$0xf] %vm904, %v784
  %914 = vst.msk [vmem:[%s3 + $0x24] sm:$0xf] %vm904, %v785
  %915 = vst.msk [vmem:[%s3 + $0x28] sm:$0xf] %vm904, %v786
  %916 = vst.msk [vmem:[%s3 + $0x2c] sm:$0xf] %vm904, %v787
  %917 = vst.msk [vmem:[%s3 + $0x30] sm:$0xf] %vm904, %v788
  %918 = vst.msk [vmem:[%s3 + $0x34] sm:$0xf] %vm904, %v789
  %919 = vst.msk [vmem:[%s3 + $0x38] sm:$0xf] %vm904, %v790
  %920 = vst.msk [vmem:[%s3 + $0x3c] sm:$0xf] %vm904, %v791
  %921 = vst.msk [vmem:[%s3 + $0x40] sm:$0xf] %vm904, %v792
  %922 = vst.msk [vmem:[%s3 + $0x44] sm:$0xf] %vm904, %v793
  %923 = vst.msk [vmem:[%s3 + $0x48] sm:$0xf] %vm904, %v794
  %924 = vst.msk [vmem:[%s3 + $0x4c] sm:$0xf] %vm904, %v795
  %925 = vst.msk [vmem:[%s3 + $0x50] sm:$0xf] %vm904, %v796
  %926 = vst.msk [vmem:[%s3 + $0x54] sm:$0xf] %vm904, %v797
  %927 = vst.msk [vmem:[%s3 + $0x58] sm:$0xf] %vm904, %v798
  %928 = vst.msk [vmem:[%s3 + $0x5c] sm:$0xf] %vm904, %v799
  %929 = vst.msk [vmem:[%s3 + $0x60] sm:$0xf] %vm904, %v800
  %930 = vst.msk [vmem:[%s3 + $0x64] sm:$0xf] %vm904, %v801
  %931 = vst.msk [vmem:[%s3 + $0x68] sm:$0xf] %vm904, %v802
  %932 = vst.msk [vmem:[%s3 + $0x6c] sm:$0xf] %vm904, %v803
  %933 = vst.msk [vmem:[%s3 + $0x70] sm:$0xf] %vm904, %v804
  %934 = vst.msk [vmem:[%s3 + $0x74] sm:$0xf] %vm904, %v805
  %935 = vst.msk [vmem:[%s3 + $0x78] sm:$0xf] %vm904, %v806
  %936 = vst.msk [vmem:[%s3 + $0x7c] sm:$0xf] %vm904, %v807
  %937 = vst.msk [vmem:[%s3 + $0x80] sm:$0xf] %vm904, %v808
  %938 = vst.msk [vmem:[%s3 + $0x84] sm:$0xf] %vm904, %v809
  %939 = vst.msk [vmem:[%s3 + $0x88] sm:$0xf] %vm904, %v810
  %940 = vst.msk [vmem:[%s3 + $0x8c] sm:$0xf] %vm904, %v811
  %941 = vst.msk [vmem:[%s3 + $0x90] sm:$0xf] %vm904, %v812
  %942 = vst.msk [vmem:[%s3 + $0x94] sm:$0xf] %vm904, %v813
  %943 = vst.msk [vmem:[%s3 + $0x98] sm:$0xf] %vm904, %v814
  %944 = vst.msk [vmem:[%s3 + $0x9c] sm:$0xf] %vm904, %v815
  %945 = vst.msk [vmem:[%s3 + $0xa0] sm:$0xf] %vm904, %v816
  %946 = vst.msk [vmem:[%s3 + $0xa4] sm:$0xf] %vm904, %v817
  %947 = vst.msk [vmem:[%s3 + $0xa8] sm:$0xf] %vm904, %v818
  %948 = vst.msk [vmem:[%s3 + $0xac] sm:$0xf] %vm904, %v819
  %949 = vst.msk [vmem:[%s3 + $0xb0] sm:$0xf] %vm904, %v820
  %950 = vst.msk [vmem:[%s3 + $0xb4] sm:$0xf] %vm904, %v821
  %951 = vst.msk [vmem:[%s3 + $0xb8] sm:$0xf] %vm904, %v822
  %952 = vst.msk [vmem:[%s3 + $0xbc] sm:$0xf] %vm904, %v823
  %953 = vst.msk [vmem:[%s3 + $0xc0] sm:$0xf] %vm904, %v824
  %954 = vst.msk [vmem:[%s3 + $0xc4] sm:$0xf] %vm904, %v825
  %955 = vst.msk [vmem:[%s3 + $0xc8] sm:$0xf] %vm904, %v826
  %956 = vst.msk [vmem:[%s3 + $0xcc] sm:$0xf] %vm904, %v827
  %957 = vst.msk [vmem:[%s3 + $0xd0] sm:$0xf] %vm904, %v828
  %958 = vst.msk [vmem:[%s3 + $0xd4] sm:$0xf] %vm904, %v829
  %959 = vst.msk [vmem:[%s3 + $0xd8] sm:$0xf] %vm904, %v830
  %960 = vst.msk [vmem:[%s3 + $0xdc] sm:$0xf] %vm904, %v831
  %961 = vst.msk [vmem:[%s3 + $0xe0] sm:$0xf] %vm904, %v832
  %962 = vst.msk [vmem:[%s3 + $0xe4] sm:$0xf] %vm904, %v833
  %963 = vst.msk [vmem:[%s3 + $0xe8] sm:$0xf] %vm904, %v834
  %964 = vst.msk [vmem:[%s3 + $0xec] sm:$0xf] %vm904, %v835
  %965 = vst.msk [vmem:[%s3 + $0xf0] sm:$0xf] %vm904, %v836
  %966 = vst.msk [vmem:[%s3 + $0xf4] sm:$0xf] %vm904, %v837
  %967 = vst.msk [vmem:[%s3 + $0xf8] sm:$0xf] %vm904, %v838
  %968 = vst.msk [vmem:[%s3 + $0xfc] sm:$0xf] %vm904, %v839
  // Predicated region
  $region14: #{matmul_bn_act.1} parent=0 // pred_check
    _
  $region15: #{matmul_bn_act.1} parent=0 // pred_check_branch
    %970 = sbr.rel (0) target = $region17
  $region16: #{matmul_bn_act.1} parent=0 // pred_region
    _
  $region17: #{matmul_bn_act.1} parent=0 // pred_fallthru
    _
  // Predicated region
  $region18: #{matmul_bn_act.1} parent=0 // pred_check
    _
  $region19: #{matmul_bn_act.1} parent=0 // pred_check_branch
    %972 = sbr.rel (0) target = $region21
  $region20: #{matmul_bn_act.1} parent=0 // pred_region
    _
  $region21: #{matmul_bn_act.1} parent=0 // pred_fallthru
    _

</llo_original>
